<compile_context>
chip_gen: v7x
topology: tpu7x:2x2x1
jax: 0.10.0
libtpu: 0.0.40
codegen_flags: <defaults>
</compile_context>

<pallas_src>
import functools
import math

import jax
import jax.numpy as jnp
from jax import lax
from jax.experimental import pallas as pl
from jax.experimental.pallas import tpu as pltpu


def _attention_kernel(*refs, norm, compute_dtype, has_mask):
    if has_mask:
        (q_ref, k_ref, v_ref, mask_ref,
         wq_ref, wk_ref, wv_ref, o_ref,
         q_scr, m_scr, l_scr, acc_scr) = refs
    else:
        (q_ref, k_ref, v_ref,
         wq_ref, wk_ref, wv_ref, o_ref,
         q_scr, m_scr, l_scr, acc_scr) = refs
        mask_ref = None

    ki = pl.program_id(2)

    @pl.when(ki == 0)
    def _init():
        # Project this query tile once per (batch, q-tile) and reuse it across
        # all KV steps; reset the online-softmax state.
        q_scr[...] = jnp.dot(
            q_ref[...], wq_ref[...], preferred_element_type=jnp.float32
        ).astype(compute_dtype)
        m_scr[...] = jnp.full_like(m_scr, -jnp.inf)
        l_scr[...] = jnp.zeros_like(l_scr)
        acc_scr[...] = jnp.zeros_like(acc_scr)

    # Project the current K/V tile (MXU, f32 accumulation).
    k_proj = jnp.dot(k_ref[...], wk_ref[...],
                     preferred_element_type=jnp.float32).astype(compute_dtype)
    v_proj = jnp.dot(v_ref[...], wv_ref[...],
                     preferred_element_type=jnp.float32).astype(compute_dtype)

    # Q K^T without an explicit transpose: contract the last axes directly.
    s = lax.dot_general(
        q_scr[...], k_proj, (((1,), (1,)), ((), ())),
        preferred_element_type=jnp.float32,
    ) * norm                                                     # (tq, tk) f32

    if has_mask:
        s = jnp.where(mask_ref[...] != 0, -jnp.inf, s)

    # Online softmax update.
    m_prev = m_scr[...]                                          # (tq, 1)
    m_new = jnp.maximum(m_prev, jnp.max(s, axis=-1, keepdims=True))
    # Rows that are fully masked so far keep m == -inf; use a "safe" max so
    # exp() never sees (-inf) - (-inf).
    m_safe = jnp.where(m_new == -jnp.inf, 0.0, m_new)
    alpha = jnp.exp(m_prev - m_safe)                             # (tq, 1)
    p = jnp.exp(s - m_safe)                                      # (tq, tk)

    l_scr[...] = alpha * l_scr[...] + jnp.sum(p, axis=-1, keepdims=True)
    acc_scr[...] = alpha * acc_scr[...] + jnp.dot(
        p.astype(compute_dtype), v_proj, preferred_element_type=jnp.float32)
    m_scr[...] = m_new

    @pl.when(ki == pl.num_programs(2) - 1)
    def _finalize():
        l = l_scr[...]
        # Fully-masked rows have l == 0 and acc == 0; make 1/l finite so the
        # output row is exactly 0 (torch.nan_to_num(softmax, 0) behavior).
        l_safe = l + (l == 0.0).astype(l.dtype)
        o_ref[...] = (acc_scr[...] * pl.reciprocal(l_safe, approx=True)
                      ).astype(o_ref.dtype)


def _pick_tile(s, target):
    """Largest tile <= target that evenly divides s (multiple of 32), else s."""
    if s <= target:
        return s
    for t in range(target, 0, -1):
        if s % t == 0 and t % 32 == 0:
            return t
    return s


def simple_attention(k, q, v, w_query, w_key, w_val, mask=None, *,
                     compute_dtype=jnp.bfloat16,
                     q_tile=256, kv_tile=256,
                     vmem_limit_bytes=None):
    """Pallas TPU implementation of SimpleAttention.forward.

    k, q, v: (B, S, H); w_*: (H, H); mask: optional (B, S, S), nonzero => -inf.
    Matmuls run in `compute_dtype` (bf16 default) with f32 accumulation;
    softmax math is f32.
    """
    B, S, H = q.shape
    out_dtype = q.dtype
    tq = _pick_tile(S, q_tile)
    tk = _pick_tile(S, kv_tile)
    nq, nk = S // tq, S // tk

    # Cast in the wrapper so HBM/VMEM traffic is in the compute dtype.
    qc = q.astype(compute_dtype)
    kc = k.astype(compute_dtype)
    vc = v.astype(compute_dtype)
    wq = w_query.astype(compute_dtype)
    wk = w_key.astype(compute_dtype)
    wv = w_val.astype(compute_dtype)

    has_mask = mask is not None

    in_specs = [
        pl.BlockSpec((pl.Squeezed(), tq, H), lambda b, qi, ki: (b, qi, 0)),  # q
        pl.BlockSpec((pl.Squeezed(), tk, H), lambda b, qi, ki: (b, ki, 0)),  # k
        pl.BlockSpec((pl.Squeezed(), tk, H), lambda b, qi, ki: (b, ki, 0)),  # v
    ]
    inputs = [qc, kc, vc]
    if has_mask:
        in_specs.append(
            pl.BlockSpec((pl.Squeezed(), tq, tk), lambda b, qi, ki: (b, qi, ki)))
        inputs.append(mask.astype(jnp.int8))   # int8: 4x less traffic than int32
    # Weights: constant index_map -> DMA'd once, resident across the grid.
    in_specs += [
        pl.BlockSpec((H, H), lambda b, qi, ki: (0, 0)),
        pl.BlockSpec((H, H), lambda b, qi, ki: (0, 0)),
        pl.BlockSpec((H, H), lambda b, qi, ki: (0, 0)),
    ]
    inputs += [wq, wk, wv]

    kernel = functools.partial(
        _attention_kernel,
        norm=1.0 / math.sqrt(H),
        compute_dtype=compute_dtype,
        has_mask=has_mask,
    )

    grid_spec = pltpu.PrefetchScalarGridSpec(
        num_scalar_prefetch=0,
        grid=(B, nq, nk),
        in_specs=in_specs,
        out_specs=pl.BlockSpec((pl.Squeezed(), tq, H), lambda b, qi, ki: (b, qi, 0)),
        scratch_shapes=[
            pltpu.VMEM((tq, H), compute_dtype),   # projected Q tile
            pltpu.VMEM((tq, 1), jnp.float32),     # running row max
            pltpu.VMEM((tq, 1), jnp.float32),     # running denominator
            pltpu.VMEM((tq, H), jnp.float32),     # output accumulator
        ],
    )

    cp_kwargs = dict(dimension_semantics=("parallel", "parallel", "arbitrary"))
    if vmem_limit_bytes is not None:
        cp_kwargs["vmem_limit_bytes"] = vmem_limit_bytes

    return pl.pallas_call(
        kernel,
        out_shape=jax.ShapeDtypeStruct((B, S, H), out_dtype),
        grid_spec=grid_spec,
        compiler_params=pltpu.CompilerParams(**cp_kwargs),
    )(*inputs)


def simple_attention_ref(k, q, v, w_query, w_key, w_val, mask=None):
    """Plain-JAX f32 reference mirroring the PyTorch forward."""
    Q = jnp.matmul(q, w_query)
    K = jnp.matmul(k, w_key)
    V = jnp.matmul(v, w_val)
    norm_factor = 1.0 / math.sqrt(Q.shape[-1])
    compat = norm_factor * jnp.matmul(Q, jnp.swapaxes(K, -1, -2))
    if mask is not None:
        compat = jnp.where(mask.astype(bool), -jnp.inf, compat)
    score = jax.nn.softmax(compat, axis=-1)
    score = jnp.nan_to_num(score, nan=0.0)
    return jnp.matmul(score, V)


if __name__ == "__main__":
    B, S, H = 2, 8, 32
    key = jax.random.PRNGKey(0)
    kq, kk, kv, kwq, kwk, kwv, kmask = jax.random.split(key, 7)

    q = jax.random.normal(kq, (B, S, H), dtype=jnp.float32)
    k = jax.random.normal(kk, (B, S, H), dtype=jnp.float32)
    v = jax.random.normal(kv, (B, S, H), dtype=jnp.float32)

    # Deterministic init matching the module: uniform(-stdv, stdv), stdv = 1/sqrt(H).
    stdv = 1.0 / math.sqrt(H)
    w_query = jax.random.uniform(kwq, (H, H), jnp.float32, -stdv, stdv)
    w_key = jax.random.uniform(kwk, (H, H), jnp.float32, -stdv, stdv)
    w_val = jax.random.uniform(kwv, (H, H), jnp.float32, -stdv, stdv)

    # Mask (True => masked out) with one fully-masked row to exercise the
    # nan_to_num(softmax) -> 0 path.
    mask = jax.random.bernoulli(kmask, 0.2, (B, S, S))
    mask = mask.at[0, 0, :].set(True)

    # 1) Unmasked path, f32 compute (tight-ish tolerance; no mask DMA at all).
    out_f32 = jax.block_until_ready(
        simple_attention(k, q, v, w_query, w_key, w_val, mask=None,
                         compute_dtype=jnp.float32))
    ref = simple_attention_ref(k, q, v, w_query, w_key, w_val, mask=None)
    assert jnp.allclose(out_f32, ref, atol=5e-3, rtol=5e-3), "unmasked f32 mismatch"

    # 2) Unmasked path, default bf16 compute (looser tolerance for bf16 drift).
    out_bf16 = jax.block_until_ready(
        simple_attention(k, q, v, w_query, w_key, w_val, mask=None))
    assert jnp.allclose(out_bf16, ref, atol=3e-2, rtol=3e-2), "unmasked bf16 mismatch"

    # 3) Masked path (int8 mask, includes a fully-masked row), bf16 compute.
    out_m = jax.block_until_ready(
        simple_attention(k, q, v, w_query, w_key, w_val, mask=mask))
    ref_m = simple_attention_ref(k, q, v, w_query, w_key, w_val, mask=mask)
    assert jnp.allclose(out_m, ref_m, atol=3e-2, rtol=3e-2), "masked bf16 mismatch"
    assert jnp.allclose(out_m[0, 0], 0.0), "fully-masked row must be exactly zero"

    print("KERNEL_OK")
</pallas_src>

<mosaic_0001>
module attributes {stable_mosaic.version = 11 : i64} {
  func.func @_attention_kernel(%arg0: i32, %arg1: i32, %arg2: i32, %arg3: memref<1x8x32xf32, #tpu.memory_space<vmem>>, %arg4: memref<1x8x32xf32, #tpu.memory_space<vmem>>, %arg5: memref<1x8x32xf32, #tpu.memory_space<vmem>>, %arg6: memref<32x32xf32, #tpu.memory_space<vmem>>, %arg7: memref<32x32xf32, #tpu.memory_space<vmem>>, %arg8: memref<32x32xf32, #tpu.memory_space<vmem>>, %arg9: memref<1x8x32xf32, #tpu.memory_space<vmem>>, %arg10: memref<8x32xf32, #tpu.memory_space<vmem>>, %arg11: memref<8x1xf32, #tpu.memory_space<vmem>>, %arg12: memref<8x1xf32, #tpu.memory_space<vmem>>, %arg13: memref<8x32xf32, #tpu.memory_space<vmem>>) attributes {dimension_semantics = [#tpu.dimension_semantics<parallel>, #tpu.dimension_semantics<parallel>, #tpu.dimension_semantics<arbitrary>], iteration_bounds = array<i64: 2, 1, 1>, scalar_prefetch = 0 : i64, scratch_operands = 4 : i64, tpu.core_type = #tpu.core_type<tc>, window_params = [{transform_indices = @transform_0, window_bounds = array<i64: 1, 8, 32>}, {transform_indices = @transform_1, window_bounds = array<i64: 1, 8, 32>}, {transform_indices = @transform_2, window_bounds = array<i64: 1, 8, 32>}, {pipeline_mode = #tpu.pipeline_mode<synchronous>, transform_indices = @transform_3, window_bounds = array<i64: 32, 32>}, {pipeline_mode = #tpu.pipeline_mode<synchronous>, transform_indices = @transform_4, window_bounds = array<i64: 32, 32>}, {pipeline_mode = #tpu.pipeline_mode<synchronous>, transform_indices = @transform_5, window_bounds = array<i64: 32, 32>}, {transform_indices = @transform_6, window_bounds = array<i64: 1, 8, 32>}]} {
    %c0_i32 = arith.constant 0 : i32
    %0 = arith.cmpi eq, %arg2, %c0_i32 : i32
    %1 = arith.extui %0 : i1 to i32
    %c0_i32_0 = arith.constant 0 : i32
    %2 = arith.cmpi ne, %1, %c0_i32_0 : i32
    scf.if %2 {
      %c0_34 = arith.constant 0 : index
      %c0_35 = arith.constant 0 : index
      %c0_36 = arith.constant 0 : index
      %44 = vector.load %arg3[%c0_34, %c0_35, %c0_36] : memref<1x8x32xf32, #tpu.memory_space<vmem>>, vector<1x8x32xf32>
      %45 = vector.shape_cast %44 : vector<1x8x32xf32> to vector<8x32xf32>
      %c0_37 = arith.constant 0 : index
      %c0_38 = arith.constant 0 : index
      %46 = vector.load %arg6[%c0_37, %c0_38] : memref<32x32xf32, #tpu.memory_space<vmem>>, vector<32x32xf32>
      %cst_39 = arith.constant dense<0.000000e+00> : vector<8x32xf32>
      %47 = tpu.matmul %45, %46, %cst_39 {dimension_numbers = #tpu.dot_dimension_numbers<[1], [0], [0], [1], [0, 0, 1, 1], [], []>} : vector<8x32xf32>, vector<32x32xf32>, vector<8x32xf32> -> vector<8x32xf32>
      %c0_40 = arith.constant 0 : index
      %c0_41 = arith.constant 0 : index
      %48 = vector.load %arg10[%c0_40, %c0_41] : memref<8x32xf32, #tpu.memory_space<vmem>>, vector<8x32xf32>
      tpu.vector_store %arg10[%c0_40, %c0_41], %47 {strides = array<i32>} : memref<8x32xf32, #tpu.memory_space<vmem>>, vector<8x32xf32>,
      %cst_42 = arith.constant 0xFF800000 : f32
      %49 = vector.broadcast %cst_42 : f32 to vector<8x1xf32>
      %c0_43 = arith.constant 0 : index
      %c0_44 = arith.constant 0 : index
      %50 = vector.load %arg11[%c0_43, %c0_44] : memref<8x1xf32, #tpu.memory_space<vmem>>, vector<8x1xf32>
      tpu.vector_store %arg11[%c0_43, %c0_44], %49 {strides = array<i32>} : memref<8x1xf32, #tpu.memory_space<vmem>>, vector<8x1xf32>,
      %cst_45 = arith.constant 0.000000e+00 : f32
      %51 = vector.broadcast %cst_45 : f32 to vector<8x1xf32>
      %c0_46 = arith.constant 0 : index
      %c0_47 = arith.constant 0 : index
      %52 = vector.load %arg12[%c0_46, %c0_47] : memref<8x1xf32, #tpu.memory_space<vmem>>, vector<8x1xf32>
      tpu.vector_store %arg12[%c0_46, %c0_47], %51 {strides = array<i32>} : memref<8x1xf32, #tpu.memory_space<vmem>>, vector<8x1xf32>,
      %cst_48 = arith.constant 0.000000e+00 : f32
      %53 = vector.broadcast %cst_48 : f32 to vector<8x32xf32>
      %c0_49 = arith.constant 0 : index
      %c0_50 = arith.constant 0 : index
      %54 = vector.load %arg13[%c0_49, %c0_50] : memref<8x32xf32, #tpu.memory_space<vmem>>, vector<8x32xf32>
      tpu.vector_store %arg13[%c0_49, %c0_50], %53 {strides = array<i32>} : memref<8x32xf32, #tpu.memory_space<vmem>>, vector<8x32xf32>,
    } else {
    }
    %c0 = arith.constant 0 : index
    %c0_1 = arith.constant 0 : index
    %c0_2 = arith.constant 0 : index
    %3 = vector.load %arg4[%c0, %c0_1, %c0_2] : memref<1x8x32xf32, #tpu.memory_space<vmem>>, vector<1x8x32xf32>
    %4 = vector.shape_cast %3 : vector<1x8x32xf32> to vector<8x32xf32>
    %c0_3 = arith.constant 0 : index
    %c0_4 = arith.constant 0 : index
    %5 = vector.load %arg7[%c0_3, %c0_4] : memref<32x32xf32, #tpu.memory_space<vmem>>, vector<32x32xf32>
    %cst = arith.constant dense<0.000000e+00> : vector<8x32xf32>
    %6 = tpu.matmul %4, %5, %cst {dimension_numbers = #tpu.dot_dimension_numbers<[1], [0], [0], [1], [0, 0, 1, 1], [], []>} : vector<8x32xf32>, vector<32x32xf32>, vector<8x32xf32> -> vector<8x32xf32>
    %c0_5 = arith.constant 0 : index
    %c0_6 = arith.constant 0 : index
    %c0_7 = arith.constant 0 : index
    %7 = vector.load %arg5[%c0_5, %c0_6, %c0_7] : memref<1x8x32xf32, #tpu.memory_space<vmem>>, vector<1x8x32xf32>
    %8 = vector.shape_cast %7 : vector<1x8x32xf32> to vector<8x32xf32>
    %c0_8 = arith.constant 0 : index
    %c0_9 = arith.constant 0 : index
    %9 = vector.load %arg8[%c0_8, %c0_9] : memref<32x32xf32, #tpu.memory_space<vmem>>, vector<32x32xf32>
    %cst_10 = arith.constant dense<0.000000e+00> : vector<8x32xf32>
    %10 = tpu.matmul %8, %9, %cst_10 {dimension_numbers = #tpu.dot_dimension_numbers<[1], [0], [0], [1], [0, 0, 1, 1], [], []>} : vector<8x32xf32>, vector<32x32xf32>, vector<8x32xf32> -> vector<8x32xf32>
    %c0_11 = arith.constant 0 : index
    %c0_12 = arith.constant 0 : index
    %11 = vector.load %arg10[%c0_11, %c0_12] : memref<8x32xf32, #tpu.memory_space<vmem>>, vector<8x32xf32>
    %cst_13 = arith.constant dense<0.000000e+00> : vector<8x8xf32>
    %12 = tpu.matmul %11, %6, %cst_13 {dimension_numbers = #tpu.dot_dimension_numbers<[1], [1], [0], [0], [0, 0, 1, 0], [], []>} : vector<8x32xf32>, vector<8x32xf32>, vector<8x8xf32> -> vector<8x8xf32>
    %cst_14 = arith.constant 0.176776692 : f32
    %13 = vector.broadcast %cst_14 : f32 to vector<8x8xf32>
    %14 = arith.mulf %12, %13 : vector<8x8xf32>
    %c0_15 = arith.constant 0 : index
    %c0_16 = arith.constant 0 : index
    %15 = vector.load %arg11[%c0_15, %c0_16] : memref<8x1xf32, #tpu.memory_space<vmem>>, vector<8x1xf32>
    %cst_17 = arith.constant dense<0xFF800000> : vector<8xf32>
    %16 = vector.multi_reduction <maximumf>, %14, %cst_17 [1] : vector<8x8xf32> to vector<8xf32>
    %17 = vector.shape_cast %16 : vector<8xf32> to vector<8x1xf32>
    %18 = arith.maximumf %15, %17 : vector<8x1xf32>
    %cst_18 = arith.constant 0xFF800000 : f32
    %19 = vector.broadcast %cst_18 : f32 to vector<8x1xf32>
    %20 = arith.cmpf oeq, %18, %19 : vector<8x1xf32>
    %cst_19 = arith.constant 0.000000e+00 : f32
    %21 = vector.broadcast %cst_19 : f32 to vector<8x1xf32>
    %22 = arith.select %20, %21, %18 : vector<8x1xi1>, vector<8x1xf32>
    %23 = arith.subf %15, %22 : vector<8x1xf32>
    %24 = math.exp %23 : vector<8x1xf32>
    %25 = vector.broadcast %22 : vector<8x1xf32> to vector<8x8xf32>
    %26 = arith.subf %14, %25 : vector<8x8xf32>
    %27 = math.exp %26 : vector<8x8xf32>
    %c0_20 = arith.constant 0 : index
    %c0_21 = arith.constant 0 : index
    %28 = vector.load %arg12[%c0_20, %c0_21] : memref<8x1xf32, #tpu.memory_space<vmem>>, vector<8x1xf32>
    %29 = arith.mulf %24, %28 : vector<8x1xf32>
    %cst_22 = arith.constant dense<0.000000e+00> : vector<8xf32>
    %30 = vector.multi_reduction <add>, %27, %cst_22 [1] : vector<8x8xf32> to vector<8xf32>
    %31 = vector.shape_cast %30 : vector<8xf32> to vector<8x1xf32>
    %32 = arith.addf %29, %31 : vector<8x1xf32>
    %c0_23 = arith.constant 0 : index
    %c0_24 = arith.constant 0 : index
    %33 = vector.load %arg12[%c0_23, %c0_24] : memref<8x1xf32, #tpu.memory_space<vmem>>, vector<8x1xf32>
    tpu.vector_store %arg12[%c0_23, %c0_24], %32 {strides = array<i32>} : memref<8x1xf32, #tpu.memory_space<vmem>>, vector<8x1xf32>,
    %c0_25 = arith.constant 0 : index
    %c0_26 = arith.constant 0 : index
    %34 = vector.load %arg13[%c0_25, %c0_26] : memref<8x32xf32, #tpu.memory_space<vmem>>, vector<8x32xf32>
    %35 = vector.broadcast %24 : vector<8x1xf32> to vector<8x32xf32>
    %36 = arith.mulf %35, %34 : vector<8x32xf32>
    %cst_27 = arith.constant dense<0.000000e+00> : vector<8x32xf32>
    %37 = tpu.matmul %27, %10, %cst_27 {dimension_numbers = #tpu.dot_dimension_numbers<[1], [0], [0], [1], [0, 0, 1, 1], [], []>} : vector<8x8xf32>, vector<8x32xf32>, vector<8x32xf32> -> vector<8x32xf32>
    %38 = arith.addf %36, %37 : vector<8x32xf32>
    %c0_28 = arith.constant 0 : index
    %c0_29 = arith.constant 0 : index
    %39 = vector.load %arg13[%c0_28, %c0_29] : memref<8x32xf32, #tpu.memory_space<vmem>>, vector<8x32xf32>
    tpu.vector_store %arg13[%c0_28, %c0_29], %38 {strides = array<i32>} : memref<8x32xf32, #tpu.memory_space<vmem>>, vector<8x32xf32>,
    %c0_30 = arith.constant 0 : index
    %c0_31 = arith.constant 0 : index
    %40 = vector.load %arg11[%c0_30, %c0_31] : memref<8x1xf32, #tpu.memory_space<vmem>>, vector<8x1xf32>
    tpu.vector_store %arg11[%c0_30, %c0_31], %18 {strides = array<i32>} : memref<8x1xf32, #tpu.memory_space<vmem>>, vector<8x1xf32>,
    %c0_i32_32 = arith.constant 0 : i32
    %41 = arith.cmpi eq, %arg2, %c0_i32_32 : i32
    %42 = arith.extui %41 : i1 to i32
    %c0_i32_33 = arith.constant 0 : i32
    %43 = arith.cmpi ne, %42, %c0_i32_33 : i32
    scf.if %43 {
      %c0_34 = arith.constant 0 : index
      %c0_35 = arith.constant 0 : index
      %44 = vector.load %arg12[%c0_34, %c0_35] : memref<8x1xf32, #tpu.memory_space<vmem>>, vector<8x1xf32>
      %cst_36 = arith.constant 0.000000e+00 : f32
      %45 = vector.broadcast %cst_36 : f32 to vector<8x1xf32>
      %46 = arith.cmpf oeq, %44, %45 : vector<8x1xf32>
      %47 = arith.extui %46 : vector<8x1xi1> to vector<8x1xi32>
      %48 = arith.sitofp %47 : vector<8x1xi32> to vector<8x1xf32>
      %49 = arith.addf %44, %48 : vector<8x1xf32>
      %c0_37 = arith.constant 0 : index
      %c0_38 = arith.constant 0 : index
      %50 = vector.load %arg13[%c0_37, %c0_38] : memref<8x32xf32, #tpu.memory_space<vmem>>, vector<8x32xf32>
      %51 = tpu.reciprocal %49 {approx = true} : vector<8x1xf32> -> vector<8x1xf32>
      %52 = vector.broadcast %51 : vector<8x1xf32> to vector<8x32xf32>
      %53 = arith.mulf %50, %52 : vector<8x32xf32>
      %c0_39 = arith.constant 0 : index
      %c0_40 = arith.constant 0 : index
      %c0_41 = arith.constant 0 : index
      %54 = vector.load %arg9[%c0_39, %c0_40, %c0_41] : memref<1x8x32xf32, #tpu.memory_space<vmem>>, vector<1x8x32xf32>
      %55 = vector.shape_cast %54 : vector<1x8x32xf32> to vector<8x32xf32>
      %56 = vector.shape_cast %53 : vector<8x32xf32> to vector<1x8x32xf32>
      tpu.vector_store %arg9[%c0_39, %c0_40, %c0_41], %56 {strides = array<i32>} : memref<1x8x32xf32, #tpu.memory_space<vmem>>, vector<1x8x32xf32>,
    } else {
    }
    return
  }
  func.func @transform_0(%arg0: i32, %arg1: i32, %arg2: i32) -> (i32, i32, i32) {
    %c0_i32 = arith.constant 0 : i32
    %c0_i32_0 = arith.constant 0 : i32
    return %arg0, %arg1, %c0_i32 : i32, i32, i32
  }
  func.func @transform_1(%arg0: i32, %arg1: i32, %arg2: i32) -> (i32, i32, i32) {
    %c0_i32 = arith.constant 0 : i32
    %c0_i32_0 = arith.constant 0 : i32
    return %arg0, %arg2, %c0_i32 : i32, i32, i32
  }
  func.func @transform_2(%arg0: i32, %arg1: i32, %arg2: i32) -> (i32, i32, i32) {
    %c0_i32 = arith.constant 0 : i32
    %c0_i32_0 = arith.constant 0 : i32
    return %arg0, %arg2, %c0_i32 : i32, i32, i32
  }
  func.func @transform_3(%arg0: i32, %arg1: i32, %arg2: i32) -> (i32, i32) {
    %c0_i32 = arith.constant 0 : i32
    %c0_i32_0 = arith.constant 0 : i32
    %c0_i32_1 = arith.constant 0 : i32
    return %c0_i32, %c0_i32_0 : i32, i32
  }
  func.func @transform_4(%arg0: i32, %arg1: i32, %arg2: i32) -> (i32, i32) {
    %c0_i32 = arith.constant 0 : i32
    %c0_i32_0 = arith.constant 0 : i32
    %c0_i32_1 = arith.constant 0 : i32
    return %c0_i32, %c0_i32_0 : i32, i32
  }
  func.func @transform_5(%arg0: i32, %arg1: i32, %arg2: i32) -> (i32, i32) {
    %c0_i32 = arith.constant 0 : i32
    %c0_i32_0 = arith.constant 0 : i32
    %c0_i32_1 = arith.constant 0 : i32
    return %c0_i32, %c0_i32_0 : i32, i32
  }
  func.func @transform_6(%arg0: i32, %arg1: i32, %arg2: i32) -> (i32, i32, i32) {
    %c0_i32 = arith.constant 0 : i32
    %c0_i32_0 = arith.constant 0 : i32
    return %arg0, %arg1, %c0_i32 : i32, i32, i32
  }
}

</mosaic_0001>

<llo_original>
// kernel: tpu_custom_call.1
$region0: #{tpu_custom_call.1}
  #allocation0 [shape = 'u32[]', space=smem, size = 0x4, offset = 0x4, fixed_abs, tag = 'smem constant byte address 0x4 - core index']
  #allocation1 [shape = 'u32[144,128]{1,0:T(1,128)}', space=vmem, size = 0x12000, scoped, tag = 'internal scratch']
  #allocation2 [shape = 'f32[8,32]{1,0:T(8,128)}', space=vmem, size = 0x1000, scoped, tag = 'scratch operand']
  #allocation3 [shape = 'f32[8,1]{1,0:T(8,128)}', space=vmem, size = 0x1000, scoped, tag = 'scratch operand']
  #allocation4 [shape = 'f32[8,1]{1,0:T(8,128)}', space=vmem, size = 0x1000, scoped, tag = 'scratch operand']
  #allocation5 [shape = 'f32[8,32]{1,0:T(8,128)}', space=vmem, size = 0x1000, scoped, tag = 'scratch operand']
  %s0 = inlined_call_operand.hbm [shape: f32[2,8,32], index: 0, kind: input, shape index: {}]
  %s1 = inlined_call_operand.hbm [shape: f32[2,8,32], index: 1, kind: input, shape index: {}]
  %s2 = inlined_call_operand.hbm [shape: f32[2,8,32], index: 2, kind: input, shape index: {}]
  %s3 = inlined_call_operand.hbm [shape: f32[32,32], index: 3, kind: input, shape index: {}]
  %s4 = inlined_call_operand.hbm [shape: f32[32,32], index: 4, kind: input, shape index: {}]
  %s5 = inlined_call_operand.hbm [shape: f32[32,32], index: 5, kind: input, shape index: {}]
  %s6 = inlined_call_operand.hbm [shape: f32[2,8,32], index: 6, kind: output, shape index: {}]
  %s7 = sld [smem:[#allocation0]]
  $region89: #{tpu_custom_call.1} parent=0
    _
  %s9 = ssub.s32 1, %s7
  %s10 = scalar_select 0, %s9, %s7
  $region1: #{tpu_custom_call.1} parent=0
    #allocation6 [shape = 'u8[8192]{0}', space=vmem, size = 0x2000, scoped, tag = 'input window, operand 0']
    #allocation7 [shape = 's32[2]{0}', space=sflag, size = 0x8, scoped, tag = 'scoped memory for tpu_custom_call.1']
    #allocation8 [shape = 's32[2]{0}', space=sflag, size = 0x8, scoped, tag = 'scoped memory for tpu_custom_call.1']
    #allocation9 [shape = 'u8[8192]{0}', space=vmem, size = 0x2000, scoped, tag = 'input window, operand 1']
    #allocation10 [shape = 's32[2]{0}', space=sflag, size = 0x8, scoped, tag = 'scoped memory for tpu_custom_call.1']
    #allocation11 [shape = 'u8[8192]{0}', space=vmem, size = 0x2000, scoped, tag = 'input window, operand 2']
    #allocation12 [shape = 'u8[16384]{0}', space=vmem, size = 0x4000, scoped, tag = 'input window, operand 3, single buffered']
    #allocation13 [shape = 's32[1]{0}', space=sflag, size = 0x4, scoped, tag = 'scoped memory for tpu_custom_call.1']
    #allocation14 [shape = 'u8[16384]{0}', space=vmem, size = 0x4000, scoped, tag = 'input window, operand 4, single buffered']
    #allocation15 [shape = 'u8[16384]{0}', space=vmem, size = 0x4000, scoped, tag = 'input window, operand 5, single buffered']
    #allocation16 [shape = 's32[1]{0}', space=sflag, size = 0x4, scoped, tag = 'scoped memory for tpu_custom_call.1']
    #allocation17 [shape = 'u8[8192]{0}', space=vmem, size = 0x2000, scoped, tag = 'output window, operand 0']
    %11 = vsyncpa [#allocation7], 0
    %s12 = scalar_lea.sflag [#allocation7], 1
    %13 = vsyncpa %s12, 0
    %14 = vsyncpa [#allocation10], 0
    %s15 = scalar_lea.sflag [#allocation10], 1
    %16 = vsyncpa %s15, 0
    %17 = vsyncpa [#allocation13], 0
    %18 = vsyncpa [#allocation16], 0
    %19 = vsyncpa [#allocation8], 0
    %s20 = scalar_lea.sflag [#allocation8], 1
    %21 = vsyncpa %s20, 0
    loop: start=0, step=1, limit=4
    $region2: #{tpu_custom_call.1} parent=1 // loop_pre_header
      _
    $region3: #{tpu_custom_call.1} parent=1 // loop_header
      %s23 = sphi 0, %s27
      %p24 = scmp.ge.s32.totalorder %s23, 4
      %s30 = sphi 0, %s49
      %s31 = sphi 0, %s45
      %s32 = sphi 0, %s41
      %s33 = sphi 0, %s30
      %s34 = sphi 0, %s31
      %s35 = sphi 0, %s32
      %s36 = sphi 0, %s33
      %s37 = sphi 0, %s34
      %s38 = sphi 0, %s35
      %s54 = sphi 0, %s56
      %s57 = sphi 0, %s54
      %s58 = sphi 0, %s57
      %s74 = sphi 0, %s58
      %s82 = sphi 0, %s84
      %s85 = sphi 0, %s82
      %s86 = sphi 0, %s85
      %s102 = sphi 0, %s86
      %s110 = sphi 0, %s112
      %s113 = sphi 0, %s110
      %s114 = sphi 0, %s113
      %s130 = sphi 0, %s114
      %s134 = sphi 0, %s134
      %s136 = sphi 0, %s134
      %s137 = sphi 0, %s136
      %s151 = sphi 0, %s137
      %s155 = sphi 0, %s155
      %s157 = sphi 0, %s155
      %s158 = sphi 0, %s157
      %s172 = sphi 0, %s158
      %s176 = sphi 0, %s176
      %s178 = sphi 0, %s176
      %s179 = sphi 0, %s178
      %s193 = sphi 0, %s179
      %s201 = sphi 0, %s203
      %s204 = sphi 0, %s201
      %s205 = sphi 0, %s204
      %s221 = sphi 0, %s205
    $region4: #{tpu_custom_call.1} parent=1 // loop_header_branch
      %26 = sbr.rel (%p24) target = $region8
    $region5: #{tpu_custom_call.1} parent=1 // loop_body
      %s28 = ssub.s32 %s23, 1
      %s29 = ssub.s32 %s23, 2
      %s39 = sadd.s32 1, %s32
      %p40 = scmp.ge.s32.totalorder %s39, 1
      %s41 = scalar_select %p40, 0, %s39
      %s42 = sadd.s32 1, %s31
      %s43 = scalar_select %p40, %s42, %s31
      %p44 = scmp.ge.s32.totalorder %s43, 1
      %s45 = scalar_select %p44, 0, %s43
      %s46 = sadd.s32 1, %s30
      %s47 = scalar_select %p44, %s46, %s30
      %p48 = scmp.ge.s32.totalorder %s47, 2
      %s49 = scalar_select %p48, 0, %s47
      %s50 = ssub.s32 %s30, %s49
      %s51 = ssub.s32 %s31, %s45
      %s52 = sor.u32 %s50, %s51
      %p53 = scmp.eq.s32.totalorder %s52, 0
      %s55 = sadd.s32 %s54, 1
      %s56 = scalar_select %p53, %s54, %s55
      %p59 = pneg %p53
      %p60 = scmp.eq.s32.totalorder %s23, 1
      %p61 = por %p59, %p60
      %p62 = scmp.ne.s32.totalorder %s54, %s57
      %p63 = scmp.eq.s32.totalorder %s23, 0
      %p64 = por %p62, %p63
      %p65 = scmp.ne.s32.totalorder %s54, %s57
      %p66 = scmp.eq.s32.totalorder %s28, 1
      %p67 = por %p65, %p66
      %p68 = scmp.ne.s32.totalorder %s57, %s58
      %p69 = scmp.eq.s32.totalorder %s28, 0
      %p70 = por %p68, %p69
      %p71 = scmp.ne.s32.totalorder %s57, %s58
      %p72 = scmp.eq.s32.totalorder %s29, 1
      %p73 = por %p71, %p72
      %p75 = scmp.ne.s32.totalorder %s58, %s74
      %p76 = scmp.eq.s32.totalorder %s29, 0
      %p77 = por %p75, %p76
      %s78 = ssub.s32 %s30, %s49
      %s79 = ssub.s32 %s32, %s41
      %s80 = sor.u32 %s78, %s79
      %p81 = scmp.eq.s32.totalorder %s80, 0
      %s83 = sadd.s32 %s82, 1
      %s84 = scalar_select %p81, %s82, %s83
      %p87 = pneg %p81
      %p88 = scmp.eq.s32.totalorder %s23, 1
      %p89 = por %p87, %p88
      %p90 = scmp.ne.s32.totalorder %s82, %s85
      %p91 = scmp.eq.s32.totalorder %s23, 0
      %p92 = por %p90, %p91
      %p93 = scmp.ne.s32.totalorder %s82, %s85
      %p94 = scmp.eq.s32.totalorder %s28, 1
      %p95 = por %p93, %p94
      %p96 = scmp.ne.s32.totalorder %s85, %s86
      %p97 = scmp.eq.s32.totalorder %s28, 0
      %p98 = por %p96, %p97
      %p99 = scmp.ne.s32.totalorder %s85, %s86
      %p100 = scmp.eq.s32.totalorder %s29, 1
      %p101 = por %p99, %p100
      %p103 = scmp.ne.s32.totalorder %s86, %s102
      %p104 = scmp.eq.s32.totalorder %s29, 0
      %p105 = por %p103, %p104
      %s106 = ssub.s32 %s30, %s49
      %s107 = ssub.s32 %s32, %s41
      %s108 = sor.u32 %s106, %s107
      %p109 = scmp.eq.s32.totalorder %s108, 0
      %s111 = sadd.s32 %s110, 1
      %s112 = scalar_select %p109, %s110, %s111
      %p115 = pneg %p109
      %p116 = scmp.eq.s32.totalorder %s23, 1
      %p117 = por %p115, %p116
      %p118 = scmp.ne.s32.totalorder %s110, %s113
      %p119 = scmp.eq.s32.totalorder %s23, 0
      %p120 = por %p118, %p119
      %p121 = scmp.ne.s32.totalorder %s110, %s113
      %p122 = scmp.eq.s32.totalorder %s28, 1
      %p123 = por %p121, %p122
      %p124 = scmp.ne.s32.totalorder %s113, %s114
      %p125 = scmp.eq.s32.totalorder %s28, 0
      %p126 = por %p124, %p125
      %p127 = scmp.ne.s32.totalorder %s113, %s114
      %p128 = scmp.eq.s32.totalorder %s29, 1
      %p129 = por %p127, %p128
      %p131 = scmp.ne.s32.totalorder %s114, %s130
      %p132 = scmp.eq.s32.totalorder %s29, 0
      %p133 = por %p131, %p132
      %s135 = sadd.s32 %s134, 1
      %p138 = scmp.eq.s32.totalorder %s23, 1
      %p139 = scmp.ne.s32.totalorder %s134, %s136
      %p140 = scmp.eq.s32.totalorder %s23, 0
      %p141 = por %p139, %p140
      %p142 = scmp.ne.s32.totalorder %s134, %s136
      %p143 = scmp.eq.s32.totalorder %s28, 1
      %p144 = por %p142, %p143
      %p145 = scmp.ne.s32.totalorder %s136, %s137
      %p146 = scmp.eq.s32.totalorder %s28, 0
      %p147 = por %p145, %p146
      %p148 = scmp.ne.s32.totalorder %s136, %s137
      %p149 = scmp.eq.s32.totalorder %s29, 1
      %p150 = por %p148, %p149
      %p152 = scmp.ne.s32.totalorder %s137, %s151
      %p153 = scmp.eq.s32.totalorder %s29, 0
      %p154 = por %p152, %p153
      %s156 = sadd.s32 %s155, 1
      %p159 = scmp.eq.s32.totalorder %s23, 1
      %p160 = scmp.ne.s32.totalorder %s155, %s157
      %p161 = scmp.eq.s32.totalorder %s23, 0
      %p162 = por %p160, %p161
      %p163 = scmp.ne.s32.totalorder %s155, %s157
      %p164 = scmp.eq.s32.totalorder %s28, 1
      %p165 = por %p163, %p164
      %p166 = scmp.ne.s32.totalorder %s157, %s158
      %p167 = scmp.eq.s32.totalorder %s28, 0
      %p168 = por %p166, %p167
      %p169 = scmp.ne.s32.totalorder %s157, %s158
      %p170 = scmp.eq.s32.totalorder %s29, 1
      %p171 = por %p169, %p170
      %p173 = scmp.ne.s32.totalorder %s158, %s172
      %p174 = scmp.eq.s32.totalorder %s29, 0
      %p175 = por %p173, %p174
      %s177 = sadd.s32 %s176, 1
      %p180 = scmp.eq.s32.totalorder %s23, 1
      %p181 = scmp.ne.s32.totalorder %s176, %s178
      %p182 = scmp.eq.s32.totalorder %s23, 0
      %p183 = por %p181, %p182
      %p184 = scmp.ne.s32.totalorder %s176, %s178
      %p185 = scmp.eq.s32.totalorder %s28, 1
      %p186 = por %p184, %p185
      %p187 = scmp.ne.s32.totalorder %s178, %s179
      %p188 = scmp.eq.s32.totalorder %s28, 0
      %p189 = por %p187, %p188
      %p190 = scmp.ne.s32.totalorder %s178, %s179
      %p191 = scmp.eq.s32.totalorder %s29, 1
      %p192 = por %p190, %p191
      %p194 = scmp.ne.s32.totalorder %s179, %s193
      %p195 = scmp.eq.s32.totalorder %s29, 0
      %p196 = por %p194, %p195
      %s197 = ssub.s32 %s30, %s49
      %s198 = ssub.s32 %s31, %s45
      %s199 = sor.u32 %s197, %s198
      %p200 = scmp.eq.s32.totalorder %s199, 0
      %s202 = sadd.s32 %s201, 1
      %s203 = scalar_select %p200, %s201, %s202
      %p206 = pneg %p200
      %p207 = scmp.eq.s32.totalorder %s23, 1
      %p208 = por %p206, %p207
      %p209 = scmp.ne.s32.totalorder %s201, %s204
      %p210 = scmp.eq.s32.totalorder %s23, 0
      %p211 = por %p209, %p210
      %p212 = scmp.ne.s32.totalorder %s201, %s204
      %p213 = scmp.eq.s32.totalorder %s28, 1
      %p214 = por %p212, %p213
      %p215 = scmp.ne.s32.totalorder %s204, %s205
      %p216 = scmp.eq.s32.totalorder %s28, 0
      %p217 = por %p215, %p216
      %p218 = scmp.ne.s32.totalorder %s204, %s205
      %p219 = scmp.eq.s32.totalorder %s29, 1
      %p220 = por %p218, %p219
      %p222 = scmp.ne.s32.totalorder %s205, %s221
      %p223 = scmp.eq.s32.totalorder %s29, 0
      %p224 = por %p222, %p223
      %p225 = scmp.le.s32.totalorder 1, %s23
      %p226 = scmp.lt.s32.totalorder %s23, 3
      %p227 = pnand %p225, %p226
      %p228 = pneg %p227
      // Predicated region
      $region9: #{tpu_custom_call.1} parent=5 // pred_check
        _
      $region10: #{tpu_custom_call.1} parent=5 // pred_check_branch
        %230 = sbr.rel (%p227) target = $region12
      $region11: #{tpu_custom_call.1} parent=5 // pred_region
        %s231 = ssub.s32 %s23, 1
        // Predicated region
        $region13: #{tpu_custom_call.1} parent=11 // pred_check
          %p232 = pneg %p147
        $region14: #{tpu_custom_call.1} parent=11 // pred_check_branch
          %234 = sbr.rel (%p232) target = $region16
        $region15: #{tpu_custom_call.1} parent=11 // pred_region
          %s236 = ssub.s32 512, 512
          %237 = vsyncadd [#allocation13], %s236
          %s238 = sshll.u32 [#allocation12], 4
          %s239 = int_to_ptr.vmem [resolvable:$true] %s238
          %244 = dma.hbm_to_vmem [thread:$0]  %s3, 512, %s239, [#allocation13], 128, 128, 8
        $region16: #{tpu_custom_call.1} parent=11 // pred_fallthru
          _
        // Predicated region
        $region17: #{tpu_custom_call.1} parent=11 // pred_check
          %p245 = pneg %p168
        $region18: #{tpu_custom_call.1} parent=11 // pred_check_branch
          %247 = sbr.rel (%p245) target = $region20
        $region19: #{tpu_custom_call.1} parent=11 // pred_region
          %s249 = ssub.s32 512, 512
          %250 = vsyncadd [#allocation13], %s249
          %s251 = sshll.u32 [#allocation14], 4
          %s252 = int_to_ptr.vmem [resolvable:$true] %s251
          %257 = dma.hbm_to_vmem [thread:$0]  %s4, 512, %s252, [#allocation13], 128, 128, 8
        $region20: #{tpu_custom_call.1} parent=11 // pred_fallthru
          _
        // Predicated region
        $region21: #{tpu_custom_call.1} parent=11 // pred_check
          %p258 = pneg %p189
        $region22: #{tpu_custom_call.1} parent=11 // pred_check_branch
          %260 = sbr.rel (%p258) target = $region24
        $region23: #{tpu_custom_call.1} parent=11 // pred_region
          %s262 = ssub.s32 512, 512
          %263 = vsyncadd [#allocation16], %s262
          %s264 = sshll.u32 [#allocation15], 4
          %s265 = int_to_ptr.vmem [resolvable:$true] %s264
          %270 = dma.hbm_to_vmem [thread:$0]  %s5, 512, %s265, [#allocation16], 128, 128, 8
        $region24: #{tpu_custom_call.1} parent=11 // pred_fallthru
          _
      $region12: #{tpu_custom_call.1} parent=5 // pred_fallthru
        _
      %p271 = scmp.lt.s32.totalorder %s23, 2
      // Predicated region
      $region25: #{tpu_custom_call.1} parent=5 // pred_check
        %p272 = pneg %p271
      $region26: #{tpu_custom_call.1} parent=5 // pred_check_branch
        %274 = sbr.rel (%p272) target = $region28
      $region27: #{tpu_custom_call.1} parent=5 // pred_region
        // Predicated region
        $region29: #{tpu_custom_call.1} parent=27 // pred_check
          %p275 = pneg %p64
        $region30: #{tpu_custom_call.1} parent=27 // pred_check_branch
          %277 = sbr.rel (%p275) target = $region32
        $region31: #{tpu_custom_call.1} parent=27 // pred_region
          %s278 = sand.u32 %s54, 1
          %s279 = scalar_lea.sflag [#allocation7], %s278
          %s280 = sand.u32 %s54, 1
          %s281 = smul.addr %s280, 8
          %s282 = scalar_lea.vmem [#allocation6], %s281
          %s284 = ssub.s32 128, 128
          %285 = vsyncadd %s279, %s284
          %s286 = sadd.s32 %s31, %s30
          %s287 = smul.addr %s286, 128
          %s288 = scalar_lea.hbm %s0, %s287
          %s290 = sshll.u32 %s282, 4
          %s291 = int_to_ptr.vmem [resolvable:$true] %s290
          %293 = dma.hbm_to_vmem [thread:$0]  %s288, 128, %s291, %s279
        $region32: #{tpu_custom_call.1} parent=27 // pred_fallthru
          _
        // Predicated region
        $region33: #{tpu_custom_call.1} parent=27 // pred_check
          %p294 = pneg %p92
        $region34: #{tpu_custom_call.1} parent=27 // pred_check_branch
          %296 = sbr.rel (%p294) target = $region36
        $region35: #{tpu_custom_call.1} parent=27 // pred_region
          %s297 = sand.u32 %s23, 1
          %s298 = scalar_lea.sflag [#allocation10], %s297
          %s299 = sand.u32 %s82, 1
          %s300 = smul.addr %s299, 8
          %s301 = scalar_lea.vmem [#allocation9], %s300
          %s303 = ssub.s32 128, 128
          %304 = vsyncadd %s298, %s303
          %s305 = sadd.s32 %s32, %s30
          %s306 = smul.addr %s305, 128
          %s307 = scalar_lea.hbm %s1, %s306
          %s309 = sshll.u32 %s301, 4
          %s310 = int_to_ptr.vmem [resolvable:$true] %s309
          %312 = dma.hbm_to_vmem [thread:$0]  %s307, 128, %s310, %s298
        $region36: #{tpu_custom_call.1} parent=27 // pred_fallthru
          _
        // Predicated region
        $region37: #{tpu_custom_call.1} parent=27 // pred_check
          %p313 = pneg %p120
        $region38: #{tpu_custom_call.1} parent=27 // pred_check_branch
          %315 = sbr.rel (%p313) target = $region40
        $region39: #{tpu_custom_call.1} parent=27 // pred_region
          %s316 = sand.u32 %s23, 1
          %s317 = scalar_lea.sflag [#allocation10], %s316
          %s318 = sand.u32 %s110, 1
          %s319 = smul.addr %s318, 8
          %s320 = scalar_lea.vmem [#allocation11], %s319
          %s322 = ssub.s32 128, 128
          %323 = vsyncadd %s317, %s322
          %s324 = sadd.s32 %s32, %s30
          %s325 = smul.addr %s324, 128
          %s326 = scalar_lea.hbm %s2, %s325
          %s328 = sshll.u32 %s320, 4
          %s329 = int_to_ptr.vmem [resolvable:$true] %s328
          %331 = dma.hbm_to_vmem [thread:$0]  %s326, 128, %s329, %s317
        $region40: #{tpu_custom_call.1} parent=27 // pred_fallthru
          _
      $region28: #{tpu_custom_call.1} parent=5 // pred_fallthru
        _
      %p332 = scmp.le.s32.totalorder 1, %s23
      %p333 = scmp.lt.s32.totalorder %s23, 3
      %p334 = pnand %p332, %p333
      %p335 = pneg %p334
      // Predicated region
      $region41: #{tpu_custom_call.1} parent=5 // pred_check
        _
      $region42: #{tpu_custom_call.1} parent=5 // pred_check_branch
        %337 = sbr.rel (%p334) target = $region44
      $region43: #{tpu_custom_call.1} parent=5 // pred_region
        %s338 = ssub.s32 %s23, 1
        %s339 = sand.u32 %s57, 1
        %s340 = scalar_lea.sflag [#allocation7], %s339
        %s341 = sand.u32 %s57, 1
        %s342 = smul.addr %s341, 8
        %s343 = scalar_lea.vmem [#allocation6], %s342
        // Predicated region
        $region45: #{tpu_custom_call.1} parent=43 // pred_check
          %p344 = pneg %p70
        $region46: #{tpu_custom_call.1} parent=43 // pred_check_branch
          %346 = sbr.rel (%p344) target = $region48
        $region47: #{tpu_custom_call.1} parent=43 // pred_region
          %347 = dma.done %s340, 128
        $region48: #{tpu_custom_call.1} parent=43 // pred_fallthru
          _
        %s348 = sand.u32 %s28, 1
        %s349 = scalar_lea.sflag [#allocation10], %s348
        %s350 = sand.u32 %s85, 1
        %s351 = smul.addr %s350, 8
        %s352 = scalar_lea.vmem [#allocation9], %s351
        // Predicated region
        $region49: #{tpu_custom_call.1} parent=43 // pred_check
          %p353 = pneg %p98
        $region50: #{tpu_custom_call.1} parent=43 // pred_check_branch
          %355 = sbr.rel (%p353) target = $region52
        $region51: #{tpu_custom_call.1} parent=43 // pred_region
          %356 = dma.done %s349, 128
        $region52: #{tpu_custom_call.1} parent=43 // pred_fallthru
          _
        %s357 = sand.u32 %s28, 1
        %s358 = scalar_lea.sflag [#allocation10], %s357
        %s359 = sand.u32 %s113, 1
        %s360 = smul.addr %s359, 8
        %s361 = scalar_lea.vmem [#allocation11], %s360
        // Predicated region
        $region53: #{tpu_custom_call.1} parent=43 // pred_check
          %p362 = pneg %p126
        $region54: #{tpu_custom_call.1} parent=43 // pred_check_branch
          %364 = sbr.rel (%p362) target = $region56
        $region55: #{tpu_custom_call.1} parent=43 // pred_region
          %365 = dma.done %s358, 128
        $region56: #{tpu_custom_call.1} parent=43 // pred_fallthru
          _
        // Predicated region
        $region57: #{tpu_custom_call.1} parent=43 // pred_check
          %p366 = pneg %p147
        $region58: #{tpu_custom_call.1} parent=43 // pred_check_branch
          %368 = sbr.rel (%p366) target = $region60
        $region59: #{tpu_custom_call.1} parent=43 // pred_region
          %369 = dma.done [#allocation13], 512
        $region60: #{tpu_custom_call.1} parent=43 // pred_fallthru
          _
        // Predicated region
        $region61: #{tpu_custom_call.1} parent=43 // pred_check
          %p370 = pneg %p168
        $region62: #{tpu_custom_call.1} parent=43 // pred_check_branch
          %372 = sbr.rel (%p370) target = $region64
        $region63: #{tpu_custom_call.1} parent=43 // pred_region
          %373 = dma.done [#allocation13], 512
        $region64: #{tpu_custom_call.1} parent=43 // pred_fallthru
          _
        // Predicated region
        $region65: #{tpu_custom_call.1} parent=43 // pred_check
          %p374 = pneg %p189
        $region66: #{tpu_custom_call.1} parent=43 // pred_check_branch
          %376 = sbr.rel (%p374) target = $region68
        $region67: #{tpu_custom_call.1} parent=43 // pred_region
          %377 = dma.done [#allocation16], 512
        $region68: #{tpu_custom_call.1} parent=43 // pred_fallthru
          _
        %s378 = sand.u32 %s57, 1
        %s379 = scalar_lea.sflag [#allocation7], %s378
        %s380 = sand.u32 %s57, 1
        %s381 = smul.addr %s380, 8
        %s382 = scalar_lea.vmem [#allocation6], %s381
        %p383 = pneg %p70
        %p384 = pneg %p67
        %s385 = sand.u32 %s28, 1
        %s386 = scalar_lea.sflag [#allocation10], %s385
        %s387 = sand.u32 %s85, 1
        %s388 = smul.addr %s387, 8
        %s389 = scalar_lea.vmem [#allocation9], %s388
        %p390 = pneg %p98
        %p391 = pneg %p95
        %s392 = sand.u32 %s28, 1
        %s393 = scalar_lea.sflag [#allocation10], %s392
        %s394 = sand.u32 %s113, 1
        %s395 = smul.addr %s394, 8
        %s396 = scalar_lea.vmem [#allocation11], %s395
        %p397 = pneg %p126
        %p398 = pneg %p123
        %p399 = pneg %p147
        %p400 = pneg %p144
        %p401 = pneg %p168
        %p402 = pneg %p165
        %p403 = pneg %p189
        %p404 = pneg %p186
        %p405 = pneg %p217
        %p406 = pneg %p214
        %s407 = sand.u32 %s204, 1
        %s408 = scalar_lea.sflag [#allocation8], %s407
        %s409 = sand.u32 %s204, 1
        %s410 = smul.addr %s409, 8
        %s411 = scalar_lea.vmem [#allocation17], %s410
        %p412 = scmp.eq.s32.totalorder %s35, 0
        // Predicated region
        $region69: #{tpu_custom_call.1} parent=43 // pred_check
          %p413 = pneg %p412
        $region70: #{tpu_custom_call.1} parent=43 // pred_check_branch
          %415 = sbr.rel (%p413) target = $region72
        $region71: #{tpu_custom_call.1} parent=43 // pred_region
          %v416 = vld [vmem:[%s343] sm:$0xff]
          %v417 = vld [vmem:[#allocation12] sm:$0xff]
          %v418 = vld [vmem:[#allocation12 + $0x8] sm:$0xff]
          %v419 = vld [vmem:[#allocation12 + $0x10] sm:$0xff]
          %v420 = vld [vmem:[#allocation12 + $0x18] sm:$0xff]
          %vm421 = vcmask 261120
          %v423 = vsel %vm421, %v416, 0
          %425 = vmatprep.subr.mxu0 0.0
          %426 = vmatpush1.msra.mxu0 %v417
          %427 = vmatprep.subr.mxu0 0.0
          %428 = vmatpush1.msra.mxu0 %v418
          %429 = vmatprep.subr.mxu0 0.0
          %430 = vmatpush1.msra.mxu0 %v419
          %431 = vmatprep.subr.mxu0 0.0
          %432 = vmatpush1.msra.mxu0 %v420
          %433 = vmatprep.subr.mxu0 0.0
          %434 = vmatpush1.msra.mxu0 0.0
          %435 = vmatprep.subr.mxu0 0.0
          %436 = vmatpush1.msra.mxu0 0.0
          %437 = vmatprep.subr.mxu0 0.0
          %438 = vmatpush1.msra.mxu0 0.0
          %439 = vmatprep.subr.mxu0 0.0
          %440 = vmatpush1.msra.mxu0 0.0
          %441 = vmatprep.subr.mxu0 0.0
          %442 = vmatpush1.msra.mxu0 0.0
          %443 = vmatprep.subr.mxu0 0.0
          %444 = vmatpush1.msra.mxu0 0.0
          %445 = vmatprep.subr.mxu0 0.0
          %446 = vmatpush1.msra.mxu0 0.0
          %447 = vmatprep.subr.mxu0 0.0
          %448 = vmatpush1.msra.mxu0 0.0
          %449 = vmatprep.subr.mxu0 0.0
          %450 = vmatpush1.msra.mxu0 0.0
          %451 = vmatprep.subr.mxu0 0.0
          %452 = vmatpush1.msra.mxu0 0.0
          %453 = vmatprep.subr.mxu0 0.0
          %454 = vmatpush1.msra.mxu0 0.0
          %455 = vmatprep.subr.mxu0 0.0
          %456 = vmatpush1.msra.mxu0 0.0
          %457 = vmatprep.subr.mxu0 0.0
          %458 = vmatpush1.msra.mxu0 0.0
          %459 = vmatprep.subr.mxu0 0.0
          %460 = vmatpush1.msra.mxu0 0.0
          %461 = vmatprep.subr.mxu0 0.0
          %462 = vmatpush1.msra.mxu0 0.0
          %463 = vmatprep.subr.mxu0 0.0
          %464 = vmatpush1.msra.mxu0 0.0
          %465 = vmatprep.subr.mxu0 0.0
          %466 = vmatpush1.msra.mxu0 0.0
          %467 = vmatprep.subr.mxu0 0.0
          %468 = vmatpush1.msra.mxu0 0.0
          %469 = vmatprep.subr.mxu0 0.0
          %470 = vmatpush1.msra.mxu0 0.0
          %471 = vmatprep.subr.mxu0 0.0
          %472 = vmatpush1.msra.mxu0 0.0
          %473 = vmatprep.subr.mxu0 0.0
          %474 = vmatpush1.msra.mxu0 0.0
          %475 = vmatprep.subr.mxu0 0.0
          %476 = vmatpush1.msra.mxu0 0.0
          %477 = vmatprep.subr.mxu0 0.0
          %478 = vmatpush1.msra.mxu0 0.0
          %479 = vmatprep.subr.mxu0 0.0
          %480 = vmatpush1.msra.mxu0 0.0
          %481 = vmatprep.subr.mxu0 0.0
          %482 = vmatpush1.msra.mxu0 0.0
          %483 = vmatprep.subr.mxu0 0.0
          %484 = vmatpush1.msra.mxu0 0.0
          %485 = vmatprep.subr.mxu0 0.0
          %486 = vmatpush1.msra.mxu0 0.0
          %487 = vmatprep.subr.mxu0 0.0
          %488 = vmatpush1.msra.mxu0 0.0
          %489 = vmatprep.mubr.f32.mxu0 0.0
          %490 = vmatmul.mubr.f32.gmra.mrb[0].mxu0 %v423
          %v491 = vpop.f32.mrb[0].mxu0
          %v492 = vadd.f32 0.0, %v491
          %v493 = vpop.f32.mrb[0].mxu0
          %494 = vdwg.mxu0
          %495 = vst.msk [vmem:[#allocation2] sm:$0xff] %vm421, %v492
          %vm496 = vcmask 7168
          %497 = vst.msk [vmem:[#allocation3] sm:$0xff] %vm496, -inf
          %498 = vst.msk [vmem:[#allocation4] sm:$0xff] %vm496, 0.0
          %499 = vst.msk [vmem:[#allocation5] sm:$0xff] %vm421, 0.0
        $region72: #{tpu_custom_call.1} parent=43 // pred_fallthru
          _
        %v500 = vld [vmem:[%s352] sm:$0xff]
        %v501 = vld [vmem:[#allocation14] sm:$0xff]
        %v502 = vld [vmem:[#allocation14 + $0x8] sm:$0xff]
        %v503 = vld [vmem:[#allocation14 + $0x10] sm:$0xff]
        %v504 = vld [vmem:[#allocation14 + $0x18] sm:$0xff]
        %vm505 = vcmask 261120
        %v507 = vsel %vm505, %v500, 0
        %509 = vmatprep.subr.mxu0 0.0
        %510 = vmatpush1.msra.mxu0 %v501
        %511 = vmatprep.subr.mxu0 0.0
        %512 = vmatpush1.msra.mxu0 %v502
        %513 = vmatprep.subr.mxu0 0.0
        %514 = vmatpush1.msra.mxu0 %v503
        %515 = vmatprep.subr.mxu0 0.0
        %516 = vmatpush1.msra.mxu0 %v504
        %517 = vmatprep.subr.mxu0 0.0
        %518 = vmatpush1.msra.mxu0 0.0
        %519 = vmatprep.subr.mxu0 0.0
        %520 = vmatpush1.msra.mxu0 0.0
        %521 = vmatprep.subr.mxu0 0.0
        %522 = vmatpush1.msra.mxu0 0.0
        %523 = vmatprep.subr.mxu0 0.0
        %524 = vmatpush1.msra.mxu0 0.0
        %525 = vmatprep.subr.mxu0 0.0
        %526 = vmatpush1.msra.mxu0 0.0
        %527 = vmatprep.subr.mxu0 0.0
        %528 = vmatpush1.msra.mxu0 0.0
        %529 = vmatprep.subr.mxu0 0.0
        %530 = vmatpush1.msra.mxu0 0.0
        %531 = vmatprep.subr.mxu0 0.0
        %532 = vmatpush1.msra.mxu0 0.0
        %533 = vmatprep.subr.mxu0 0.0
        %534 = vmatpush1.msra.mxu0 0.0
        %535 = vmatprep.subr.mxu0 0.0
        %536 = vmatpush1.msra.mxu0 0.0
        %537 = vmatprep.subr.mxu0 0.0
        %538 = vmatpush1.msra.mxu0 0.0
        %539 = vmatprep.subr.mxu0 0.0
        %540 = vmatpush1.msra.mxu0 0.0
        %541 = vmatprep.subr.mxu0 0.0
        %542 = vmatpush1.msra.mxu0 0.0
        %543 = vmatprep.subr.mxu0 0.0
        %544 = vmatpush1.msra.mxu0 0.0
        %545 = vmatprep.subr.mxu0 0.0
        %546 = vmatpush1.msra.mxu0 0.0
        %547 = vmatprep.subr.mxu0 0.0
        %548 = vmatpush1.msra.mxu0 0.0
        %549 = vmatprep.subr.mxu0 0.0
        %550 = vmatpush1.msra.mxu0 0.0
        %551 = vmatprep.subr.mxu0 0.0
        %552 = vmatpush1.msra.mxu0 0.0
        %553 = vmatprep.subr.mxu0 0.0
        %554 = vmatpush1.msra.mxu0 0.0
        %555 = vmatprep.subr.mxu0 0.0
        %556 = vmatpush1.msra.mxu0 0.0
        %557 = vmatprep.subr.mxu0 0.0
        %558 = vmatpush1.msra.mxu0 0.0
        %559 = vmatprep.subr.mxu0 0.0
        %560 = vmatpush1.msra.mxu0 0.0
        %561 = vmatprep.subr.mxu0 0.0
        %562 = vmatpush1.msra.mxu0 0.0
        %563 = vmatprep.subr.mxu0 0.0
        %564 = vmatpush1.msra.mxu0 0.0
        %565 = vmatprep.subr.mxu0 0.0
        %566 = vmatpush1.msra.mxu0 0.0
        %567 = vmatprep.subr.mxu0 0.0
        %568 = vmatpush1.msra.mxu0 0.0
        %569 = vmatprep.subr.mxu0 0.0
        %570 = vmatpush1.msra.mxu0 0.0
        %571 = vmatprep.subr.mxu0 0.0
        %572 = vmatpush1.msra.mxu0 0.0
        %573 = vmatprep.mubr.f32.mxu0 0.0
        %574 = vmatmul.mubr.f32.gmra.mrb[0].mxu0 %v507
        %v575 = vpop.f32.mrb[0].mxu0
        %v576 = vadd.f32 0.0, %v575
        %v577 = vpop.f32.mrb[0].mxu0
        %578 = vdwg.mxu0
        %v579 = vld [vmem:[%s361] sm:$0xff]
        %v580 = vld [vmem:[#allocation15] sm:$0xff]
        %v581 = vld [vmem:[#allocation15 + $0x8] sm:$0xff]
        %v582 = vld [vmem:[#allocation15 + $0x10] sm:$0xff]
        %v583 = vld [vmem:[#allocation15 + $0x18] sm:$0xff]
        %v585 = vsel %vm505, %v579, 0
        %587 = vmatprep.subr.mxu0 0.0
        %588 = vmatpush1.msra.mxu0 %v580
        %589 = vmatprep.subr.mxu0 0.0
        %590 = vmatpush1.msra.mxu0 %v581
        %591 = vmatprep.subr.mxu0 0.0
        %592 = vmatpush1.msra.mxu0 %v582
        %593 = vmatprep.subr.mxu0 0.0
        %594 = vmatpush1.msra.mxu0 %v583
        %595 = vmatprep.subr.mxu0 0.0
        %596 = vmatpush1.msra.mxu0 0.0
        %597 = vmatprep.subr.mxu0 0.0
        %598 = vmatpush1.msra.mxu0 0.0
        %599 = vmatprep.subr.mxu0 0.0
        %600 = vmatpush1.msra.mxu0 0.0
        %601 = vmatprep.subr.mxu0 0.0
        %602 = vmatpush1.msra.mxu0 0.0
        %603 = vmatprep.subr.mxu0 0.0
        %604 = vmatpush1.msra.mxu0 0.0
        %605 = vmatprep.subr.mxu0 0.0
        %606 = vmatpush1.msra.mxu0 0.0
        %607 = vmatprep.subr.mxu0 0.0
        %608 = vmatpush1.msra.mxu0 0.0
        %609 = vmatprep.subr.mxu0 0.0
        %610 = vmatpush1.msra.mxu0 0.0
        %611 = vmatprep.subr.mxu0 0.0
        %612 = vmatpush1.msra.mxu0 0.0
        %613 = vmatprep.subr.mxu0 0.0
        %614 = vmatpush1.msra.mxu0 0.0
        %615 = vmatprep.subr.mxu0 0.0
        %616 = vmatpush1.msra.mxu0 0.0
        %617 = vmatprep.subr.mxu0 0.0
        %618 = vmatpush1.msra.mxu0 0.0
        %619 = vmatprep.subr.mxu0 0.0
        %620 = vmatpush1.msra.mxu0 0.0
        %621 = vmatprep.subr.mxu0 0.0
        %622 = vmatpush1.msra.mxu0 0.0
        %623 = vmatprep.subr.mxu0 0.0
        %624 = vmatpush1.msra.mxu0 0.0
        %625 = vmatprep.subr.mxu0 0.0
        %626 = vmatpush1.msra.mxu0 0.0
        %627 = vmatprep.subr.mxu0 0.0
        %628 = vmatpush1.msra.mxu0 0.0
        %629 = vmatprep.subr.mxu0 0.0
        %630 = vmatpush1.msra.mxu0 0.0
        %631 = vmatprep.subr.mxu0 0.0
        %632 = vmatpush1.msra.mxu0 0.0
        %633 = vmatprep.subr.mxu0 0.0
        %634 = vmatpush1.msra.mxu0 0.0
        %635 = vmatprep.subr.mxu0 0.0
        %636 = vmatpush1.msra.mxu0 0.0
        %637 = vmatprep.subr.mxu0 0.0
        %638 = vmatpush1.msra.mxu0 0.0
        %639 = vmatprep.subr.mxu0 0.0
        %640 = vmatpush1.msra.mxu0 0.0
        %641 = vmatprep.subr.mxu0 0.0
        %642 = vmatpush1.msra.mxu0 0.0
        %643 = vmatprep.subr.mxu0 0.0
        %644 = vmatpush1.msra.mxu0 0.0
        %645 = vmatprep.subr.mxu0 0.0
        %646 = vmatpush1.msra.mxu0 0.0
        %647 = vmatprep.subr.mxu0 0.0
        %648 = vmatpush1.msra.mxu0 0.0
        %649 = vmatprep.subr.mxu0 0.0
        %650 = vmatpush1.msra.mxu0 0.0
        %651 = vmatprep.mubr.f32.mxu0 0.0
        %652 = vmatmul.mubr.f32.gmra.mrb[0].mxu0 %v585
        %v653 = vpop.f32.mrb[0].mxu0
        %v654 = vadd.f32 0.0, %v653
        %v655 = vpop.f32.mrb[0].mxu0
        %656 = vdwg.mxu0
        %v657 = vld [vmem:[#allocation2] sm:$0xff]
        %v659 = vsel %vm505, %v657, 0
        %v662 = vsel %vm505, %v576, 0
        %664 = vmatprep.subr.mxu0 0.0
        %665 = vmatpush1.xpose.msra.mxu0 %v662
        %666 = vmatprep.subr.mxu0 0.0
        %667 = vmatpush1.xpose.msra.mxu0 0.0
        %668 = vmatprep.subr.mxu0 0.0
        %669 = vmatpush1.xpose.msra.mxu0 0.0
        %670 = vmatprep.subr.mxu0 0.0
        %671 = vmatpush1.xpose.msra.mxu0 0.0
        %672 = vmatprep.subr.mxu0 0.0
        %673 = vmatpush1.xpose.msra.mxu0 0.0
        %674 = vmatprep.subr.mxu0 0.0
        %675 = vmatpush1.xpose.msra.mxu0 0.0
        %676 = vmatprep.subr.mxu0 0.0
        %677 = vmatpush1.xpose.msra.mxu0 0.0
        %678 = vmatprep.subr.mxu0 0.0
        %679 = vmatpush1.xpose.msra.mxu0 0.0
        %680 = vmatprep.subr.mxu0 0.0
        %681 = vmatpush1.xpose.msra.mxu0 0.0
        %682 = vmatprep.subr.mxu0 0.0
        %683 = vmatpush1.xpose.msra.mxu0 0.0
        %684 = vmatprep.subr.mxu0 0.0
        %685 = vmatpush1.xpose.msra.mxu0 0.0
        %686 = vmatprep.subr.mxu0 0.0
        %687 = vmatpush1.xpose.msra.mxu0 0.0
        %688 = vmatprep.subr.mxu0 0.0
        %689 = vmatpush1.xpose.msra.mxu0 0.0
        %690 = vmatprep.subr.mxu0 0.0
        %691 = vmatpush1.xpose.msra.mxu0 0.0
        %692 = vmatprep.subr.mxu0 0.0
        %693 = vmatpush1.xpose.msra.mxu0 0.0
        %694 = vmatprep.subr.mxu0 0.0
        %695 = vmatpush1.xpose.msra.mxu0 0.0
        %696 = vmatprep.subr.mxu0 0.0
        %697 = vmatpush1.xpose.msra.mxu0 0.0
        %698 = vmatprep.subr.mxu0 0.0
        %699 = vmatpush1.xpose.msra.mxu0 0.0
        %700 = vmatprep.subr.mxu0 0.0
        %701 = vmatpush1.xpose.msra.mxu0 0.0
        %702 = vmatprep.subr.mxu0 0.0
        %703 = vmatpush1.xpose.msra.mxu0 0.0
        %704 = vmatprep.subr.mxu0 0.0
        %705 = vmatpush1.xpose.msra.mxu0 0.0
        %706 = vmatprep.subr.mxu0 0.0
        %707 = vmatpush1.xpose.msra.mxu0 0.0
        %708 = vmatprep.subr.mxu0 0.0
        %709 = vmatpush1.xpose.msra.mxu0 0.0
        %710 = vmatprep.subr.mxu0 0.0
        %711 = vmatpush1.xpose.msra.mxu0 0.0
        %712 = vmatprep.subr.mxu0 0.0
        %713 = vmatpush1.xpose.msra.mxu0 0.0
        %714 = vmatprep.subr.mxu0 0.0
        %715 = vmatpush1.xpose.msra.mxu0 0.0
        %716 = vmatprep.subr.mxu0 0.0
        %717 = vmatpush1.xpose.msra.mxu0 0.0
        %718 = vmatprep.subr.mxu0 0.0
        %719 = vmatpush1.xpose.msra.mxu0 0.0
        %720 = vmatprep.subr.mxu0 0.0
        %721 = vmatpush1.xpose.msra.mxu0 0.0
        %722 = vmatprep.subr.mxu0 0.0
        %723 = vmatpush1.xpose.msra.mxu0 0.0
        %724 = vmatprep.subr.mxu0 0.0
        %725 = vmatpush1.xpose.msra.mxu0 0.0
        %726 = vmatprep.subr.mxu0 0.0
        %727 = vmatpush1.xpose.msra.mxu0 0.0
        %728 = vmatprep.mubr.f32.mxu0 0.0
        %729 = vmatmul.mubr.f32.gmra.mrb[0].mxu0 %v659
        %v730 = vpop.f32.mrb[0].mxu0
        %v731 = vadd.f32 0.0, %v730
        %v732 = vpop.f32.mrb[0].mxu0
        %733 = vdwg.mxu0
        %v734 = vmul.f32 %v731, 0.17677669
        %v735 = vld [vmem:[#allocation3] sm:$0xff]
        %vm736 = vcmask 64512
        %v737 = vsel %vm736, %v734, -inf
        %738 = vmax.xlane.f32.xlu0 %v737
        %v739 = vpop.xlane.xlu0 %738
        %v740 = vmax.f32 %v735, %v739
        %vm741 = vcmp.eq.f32.partialorder %v740, -inf
        %v742 = vsel %vm741, 0.0, %v740
        %v743 = vsub.f32 %v735, %v742
        %v744 = vmul.f32 %v743, 1.442695
        %v745 = vpow.pop %v744
        %747 = vset.pattern.permute.xlu0 0
        %748 = vperm.xlu0 %747, %v742
        %v749 = vpop.permute.xlu0 %748
        %v751 = vsub.f32 %v734, %v749
        %v752 = vmul.f32 %v751, 1.442695
        %v753 = vpow.pop %v752
        %v754 = vld [vmem:[#allocation4] sm:$0xff]
        %v755 = vmul.f32 %v745, %v754
        %v756 = vsel %vm736, %v753, 0.0
        %757 = vadd.xlane.f32.xlu0 %v756
        %v758 = vpop.xlane.xlu0 %757
        %v759 = vadd.f32 %v755, %v758
        %vm760 = vcmask 7168
        %761 = vst.msk [vmem:[#allocation4] sm:$0xff] %vm760, %v759
        %v762 = vld [vmem:[#allocation5] sm:$0xff]
        %764 = vset.pattern.permute.xlu0 0
        %765 = vperm.xlu0 %764, %v745
        %v766 = vpop.permute.xlu0 %765
        %v768 = vmul.f32 %v766, %v762
        %v770 = vsel %vm736, %v753, 0
        %772 = vmatprep.subr.mxu0 0.0
        %773 = vmatpush1.msra.mxu0 %v654
        %774 = vmatprep.subr.mxu0 0.0
        %775 = vmatpush1.msra.mxu0 0.0
        %776 = vmatprep.subr.mxu0 0.0
        %777 = vmatpush1.msra.mxu0 0.0
        %778 = vmatprep.subr.mxu0 0.0
        %779 = vmatpush1.msra.mxu0 0.0
        %780 = vmatprep.subr.mxu0 0.0
        %781 = vmatpush1.msra.mxu0 0.0
        %782 = vmatprep.subr.mxu0 0.0
        %783 = vmatpush1.msra.mxu0 0.0
        %784 = vmatprep.subr.mxu0 0.0
        %785 = vmatpush1.msra.mxu0 0.0
        %786 = vmatprep.subr.mxu0 0.0
        %787 = vmatpush1.msra.mxu0 0.0
        %788 = vmatprep.subr.mxu0 0.0
        %789 = vmatpush1.msra.mxu0 0.0
        %790 = vmatprep.subr.mxu0 0.0
        %791 = vmatpush1.msra.mxu0 0.0
        %792 = vmatprep.subr.mxu0 0.0
        %793 = vmatpush1.msra.mxu0 0.0
        %794 = vmatprep.subr.mxu0 0.0
        %795 = vmatpush1.msra.mxu0 0.0
        %796 = vmatprep.subr.mxu0 0.0
        %797 = vmatpush1.msra.mxu0 0.0
        %798 = vmatprep.subr.mxu0 0.0
        %799 = vmatpush1.msra.mxu0 0.0
        %800 = vmatprep.subr.mxu0 0.0
        %801 = vmatpush1.msra.mxu0 0.0
        %802 = vmatprep.subr.mxu0 0.0
        %803 = vmatpush1.msra.mxu0 0.0
        %804 = vmatprep.subr.mxu0 0.0
        %805 = vmatpush1.msra.mxu0 0.0
        %806 = vmatprep.subr.mxu0 0.0
        %807 = vmatpush1.msra.mxu0 0.0
        %808 = vmatprep.subr.mxu0 0.0
        %809 = vmatpush1.msra.mxu0 0.0
        %810 = vmatprep.subr.mxu0 0.0
        %811 = vmatpush1.msra.mxu0 0.0
        %812 = vmatprep.subr.mxu0 0.0
        %813 = vmatpush1.msra.mxu0 0.0
        %814 = vmatprep.subr.mxu0 0.0
        %815 = vmatpush1.msra.mxu0 0.0
        %816 = vmatprep.subr.mxu0 0.0
        %817 = vmatpush1.msra.mxu0 0.0
        %818 = vmatprep.subr.mxu0 0.0
        %819 = vmatpush1.msra.mxu0 0.0
        %820 = vmatprep.subr.mxu0 0.0
        %821 = vmatpush1.msra.mxu0 0.0
        %822 = vmatprep.subr.mxu0 0.0
        %823 = vmatpush1.msra.mxu0 0.0
        %824 = vmatprep.subr.mxu0 0.0
        %825 = vmatpush1.msra.mxu0 0.0
        %826 = vmatprep.subr.mxu0 0.0
        %827 = vmatpush1.msra.mxu0 0.0
        %828 = vmatprep.subr.mxu0 0.0
        %829 = vmatpush1.msra.mxu0 0.0
        %830 = vmatprep.subr.mxu0 0.0
        %831 = vmatpush1.msra.mxu0 0.0
        %832 = vmatprep.subr.mxu0 0.0
        %833 = vmatpush1.msra.mxu0 0.0
        %834 = vmatprep.subr.mxu0 0.0
        %835 = vmatpush1.msra.mxu0 0.0
        %836 = vmatprep.mubr.f32.mxu0 0.0
        %837 = vmatmul.mubr.f32.gmra.mrb[0].mxu0 %v770
        %v838 = vpop.f32.mrb[0].mxu0
        %v839 = vadd.f32 0.0, %v838
        %v840 = vpop.f32.mrb[0].mxu0
        %841 = vdwg.mxu0
        %v842 = vadd.f32 %v768, %v839
        %843 = vst.msk [vmem:[#allocation5] sm:$0xff] %vm505, %v842
        %844 = vst.msk [vmem:[#allocation3] sm:$0xff] %vm760, %v740
        // Predicated region
        $region73: #{tpu_custom_call.1} parent=43 // pred_check
          %p845 = pneg %p412
        $region74: #{tpu_custom_call.1} parent=43 // pred_check_branch
          %847 = sbr.rel (%p845) target = $region76
        $region75: #{tpu_custom_call.1} parent=43 // pred_region
          %v848 = vld [vmem:[#allocation4] sm:$0xff]
          %vm849 = vcmp.eq.f32.partialorder %v848, 0.0
          %v850 = vsel %vm849, 1, 0
          %v851 = vcvt.s32.f32 %v850
          %v852 = vadd.f32 %v848, %v851
          %v853 = vld [vmem:[#allocation5] sm:$0xff]
          %v854 = vrcp.pop %v852
          %856 = vset.pattern.permute.xlu0 0
          %857 = vperm.xlu0 %856, %v854
          %v858 = vpop.permute.xlu0 %857
          %v860 = vmul.f32 %v853, %v858
          %861 = vst.msk [vmem:[%s411] sm:$0xff] %vm505, %v860
        $region76: #{tpu_custom_call.1} parent=43 // pred_fallthru
          _
        %s862 = sand.u32 %s204, 1
        %s863 = scalar_lea.sflag [#allocation8], %s862
        %s864 = sand.u32 %s204, 1
        %s865 = smul.addr %s864, 8
        %s866 = scalar_lea.vmem [#allocation17], %s865
        // Predicated region
        $region77: #{tpu_custom_call.1} parent=43 // pred_check
          %p867 = pneg %p214
        $region78: #{tpu_custom_call.1} parent=43 // pred_check_branch
          %869 = sbr.rel (%p867) target = $region80
        $region79: #{tpu_custom_call.1} parent=43 // pred_region
          %s871 = ssub.s32 128, 128
          %872 = vsyncadd %s863, %s871
          %s873 = sadd.s32 %s34, %s33
          %s874 = smul.addr %s873, 128
          %s875 = scalar_lea.hbm %s6, %s874
          %s877 = sshll.u32 %s866, 4
          %s878 = int_to_ptr.vmem [resolvable:$true] %s877
          %880 = dma.vmem_to_hbm [thread:$0]  %s878, 128, %s875, %s863
        $region80: #{tpu_custom_call.1} parent=43 // pred_fallthru
          _
      $region44: #{tpu_custom_call.1} parent=5 // pred_fallthru
        _
      %p881 = scmp.le.s32.totalorder 2, %s23
      // Predicated region
      $region81: #{tpu_custom_call.1} parent=5 // pred_check
        %p882 = pneg %p881
      $region82: #{tpu_custom_call.1} parent=5 // pred_check_branch
        %884 = sbr.rel (%p882) target = $region84
      $region83: #{tpu_custom_call.1} parent=5 // pred_region
        %s885 = ssub.s32 %s23, 2
        // Predicated region
        $region85: #{tpu_custom_call.1} parent=83 // pred_check
          %p886 = pneg %p220
        $region86: #{tpu_custom_call.1} parent=83 // pred_check_branch
          %888 = sbr.rel (%p886) target = $region88
        $region87: #{tpu_custom_call.1} parent=83 // pred_region
          %s889 = sand.u32 %s205, 1
          %s890 = scalar_lea.sflag [#allocation8], %s889
          %s891 = sand.u32 %s205, 1
          %s892 = smul.addr %s891, 8
          %s893 = scalar_lea.vmem [#allocation17], %s892
          %894 = dma.done %s890, 128
        $region88: #{tpu_custom_call.1} parent=83 // pred_fallthru
          _
      $region84: #{tpu_custom_call.1} parent=5 // pred_fallthru
        _
    $region6: #{tpu_custom_call.1} parent=1 // loop_footer
      %s27 = sadd.s32 1, %s23
    $region7: #{tpu_custom_call.1} parent=1 // loop_footer_branch
      %22 = sbr.rel target = $region3
    $region8: #{tpu_custom_call.1} parent=1 // loop_exit
      _
    %895 = vsyncpa [#allocation7], 1
    %s896 = scalar_lea.sflag [#allocation7], 1
    %897 = vsyncpa %s896, 1
    %898 = vsyncpa [#allocation10], 1
    %s899 = scalar_lea.sflag [#allocation10], 1
    %900 = vsyncpa %s899, 1
    %901 = vsyncpa [#allocation13], 1
    %902 = vsyncpa [#allocation16], 1
    %903 = vsyncpa [#allocation8], 1
    %s904 = scalar_lea.sflag [#allocation8], 1
    %905 = vsyncpa %s904, 1

</llo_original>
